<compile_context>
chip_gen: v7x
topology: tpu7x:2x2x1
jax: 0.10.0
libtpu: 0.0.40
codegen_flags: <defaults>
</compile_context>

<pallas_src>
import jax
import jax.numpy as jnp
from jax.experimental import pallas as pl
from jax.experimental.pallas import tpu as pltpu

_EPS = 1e-12          # exactly the PyTorch module's self.eps (sqrt(d*d + eps))
_LANES = 128
_SUBLANES = 8


def _charbonnier_kernel(x_ref, y_ref, o_ref):
    """One (block_rows, 128) tile: accumulate sum(sqrt((x-y)^2 + eps))."""
    @pl.when(pl.program_id(1) == 0)
    def _():
        o_ref[...] = jnp.zeros_like(o_ref)

    x = x_ref[...].astype(jnp.float32)
    y = y_ref[...].astype(jnp.float32)
    diff = x - y
    # NOTE(v7x): if a bundle dump shows the single EUP pipe saturating on sqrt
    # at the 3.2 TB/s stream rate, switch to
    #   t = diff * diff + eps; err = t * jax.lax.rsqrt(t)
    # (rsqrt is the native EUP op; the extra multiply rides idle VALU slots).
    err = jnp.sqrt(diff * diff + jnp.float32(_EPS))

    # Fold the (block_rows, 128) tile into an (8, 128) vreg-shaped partial sum:
    # pure VPU adds, free under the memory-bound roofline.  The single
    # cross-lane/sublane reduce happens once, in the wrapper.
    o_ref[0, :, :] += err.reshape(-1, _SUBLANES, _LANES).sum(axis=0)


def _sublane_multiple(*dtypes):
    """Sublane alignment for the block's second-minor dim (8/16/32 by width)."""
    m = _SUBLANES
    for dt in dtypes:
        m = max(m, 32 // max(1, jnp.dtype(dt).itemsize))
    return m


def _device_config():
    """Generation-aware defaults (heuristic; wrong guess only costs perf)."""
    try:
        kind = jax.devices()[0].device_kind.lower()
    except Exception:  # pragma: no cover - defensive
        kind = ""
    if "v7" in kind:
        # 64 MiB physical VMEM, 2 TensorCores/chip.
        return dict(max_block_rows=8192, num_chunks=2,
                    vmem_limit=40 * 1024 * 1024)
    if ("v4" in kind) or ("v5" in kind) or ("v6" in kind):
        two_core = ("v4" in kind) or ("v5p" in kind) or ("v5 p" in kind)
        # 128 MiB physical VMEM: bigger steps shave remaining per-step overhead.
        return dict(max_block_rows=16384, num_chunks=2 if two_core else 1,
                    vmem_limit=80 * 1024 * 1024)
    # Unknown generation: conservative settings that fit every chip.
    return dict(max_block_rows=8192, num_chunks=1, vmem_limit=40 * 1024 * 1024)


def l1_charbonnier_loss(x, y, *, max_block_rows=None, num_chunks=None):
    assert x.shape == y.shape, "X and Y must have the same shape"
    n_valid = int(x.size)

    cfg = _device_config()
    if max_block_rows is None:
        max_block_rows = cfg["max_block_rows"]
    if num_chunks is None:
        num_chunks = cfg["num_chunks"]
    vmem_limit = cfg["vmem_limit"]

    xf = x.reshape(-1)
    yf = y.reshape(-1)

    align = _sublane_multiple(x.dtype, y.dtype)
    n_rows = n_valid // _LANES          # full lane-dense rows
    rem = n_valid - n_rows * _LANES     # < 128 ragged elements

    kernel_rows = 0
    n_par = 1
    if n_rows >= align:
        block_rows = min(max_block_rows, (n_rows // align) * align)
        total_blocks = n_rows // block_rows
        n_par = num_chunks if (num_chunks > 1 and total_blocks >= num_chunks) else 1
        n_steps = total_blocks // n_par          # balanced chunks, no overhang
        kernel_rows = n_par * n_steps * block_rows
    kernel_elems = kernel_rows * _LANES

    core_sum = jnp.float32(0.0)
    if kernel_rows > 0:
        if rem == 0:
            # Zero-copy reshape; the grid simply doesn't touch rows past
            # kernel_rows (if any), which go to the jnp tail below.
            x2d = xf.reshape(n_rows, _LANES)
            y2d = yf.reshape(n_rows, _LANES)
        else:
            # TODO(synk): prefix slice may materialize a copy of the bulk when
            # numel % 128 != 0 (rare for NCHW image tensors).
            x2d = xf[: n_rows * _LANES].reshape(n_rows, _LANES)
            y2d = yf[: n_rows * _LANES].reshape(n_rows, _LANES)

        in_map = lambda p, s: (p * n_steps + s, 0)

        partials = pl.pallas_call(
            _charbonnier_kernel,
            out_shape=jax.ShapeDtypeStruct((n_par, _SUBLANES, _LANES),
                                           jnp.float32),
            grid_spec=pltpu.PrefetchScalarGridSpec(
                num_scalar_prefetch=0,
                grid=(n_par, n_steps),
                in_specs=[
                    pl.BlockSpec((block_rows, _LANES), in_map),
                    pl.BlockSpec((block_rows, _LANES), in_map),
                ],
                out_specs=pl.BlockSpec((1, _SUBLANES, _LANES),
                                       lambda p, s: (p, 0, 0)),
            ),
            compiler_params=pltpu.CompilerParams(
                dimension_semantics=("parallel", "arbitrary"),
                vmem_limit_bytes=vmem_limit,
            ),
        )(x2d, y2d)
        # Tiny (n_par, 8, 128) cross-lane reduce outside the kernel.
        core_sum = jnp.sum(partials)

    # Exact tail: uncovered rows + ragged (<128) remainder, reduced with plain
    # jnp (bounded by ~2 blocks' worth of elements; usually empty for aligned
    # NCHW activations).
    tail_sum = jnp.float32(0.0)
    if kernel_elems < n_valid:
        tx = xf[kernel_elems:].astype(jnp.float32)
        ty = yf[kernel_elems:].astype(jnp.float32)
        td = tx - ty
        tail_sum = jnp.sum(jnp.sqrt(td * td + jnp.float32(_EPS)))

    # NOTE: f32 sequential per-lane accumulation drifts ~1e-4 relative only for
    # >=1e8-element inputs; fine at the tolerances used here.
    return (core_sum + tail_sum) / jnp.float32(n_valid)


def _reference(x, y):
    diff = x.astype(jnp.float32) - y.astype(jnp.float32)
    return jnp.mean(jnp.sqrt(diff * diff + _EPS))


if __name__ == "__main__":
    key = jax.random.PRNGKey(0)
    kx, ky = jax.random.split(key)
    # NCHW, small shapes (matches the PyTorch module's expected inputs)
    x = jax.random.normal(kx, (2, 4, 16, 16), dtype=jnp.float32)
    y = jax.random.normal(ky, (2, 4, 16, 16), dtype=jnp.float32)

    loss = jax.jit(l1_charbonnier_loss)(x, y)
    jax.block_until_ready(loss)

    ref = _reference(x, y)
    assert jnp.allclose(loss, ref, rtol=1e-5, atol=1e-6), (loss, ref)
    print("KERNEL_OK")
</pallas_src>

<mosaic_0001>
module attributes {stable_mosaic.version = 11 : i64} {
  func.func @_charbonnier_kernel(%arg0: i32, %arg1: i32, %arg2: memref<16x128xf32, #tpu.memory_space<vmem>>, %arg3: memref<16x128xf32, #tpu.memory_space<vmem>>, %arg4: memref<1x8x128xf32, #tpu.memory_space<vmem>>) attributes {dimension_semantics = [#tpu.dimension_semantics<parallel>, #tpu.dimension_semantics<arbitrary>], iteration_bounds = array<i64: 1, 1>, scalar_prefetch = 0 : i64, scratch_operands = 0 : i64, tpu.core_type = #tpu.core_type<tc>, window_params = [{transform_indices = @transform_0, window_bounds = array<i64: 16, 128>}, {transform_indices = @transform_1, window_bounds = array<i64: 16, 128>}, {transform_indices = @transform_2, window_bounds = array<i64: 1, 8, 128>}]} {
    %c0_i32 = arith.constant 0 : i32
    %0 = arith.cmpi eq, %arg1, %c0_i32 : i32
    %1 = arith.extui %0 : i1 to i32
    %c0_i32_0 = arith.constant 0 : i32
    %2 = arith.cmpi ne, %1, %c0_i32_0 : i32
    scf.if %2 {
      %cst_11 = arith.constant 0.000000e+00 : f32
      %18 = vector.broadcast %cst_11 : f32 to vector<1x8x128xf32>
      %c0_12 = arith.constant 0 : index
      %c0_13 = arith.constant 0 : index
      %c0_14 = arith.constant 0 : index
      %19 = vector.load %arg4[%c0_12, %c0_13, %c0_14] : memref<1x8x128xf32, #tpu.memory_space<vmem>>, vector<1x8x128xf32>
      tpu.vector_store %arg4[%c0_12, %c0_13, %c0_14], %18 {strides = array<i32>} : memref<1x8x128xf32, #tpu.memory_space<vmem>>, vector<1x8x128xf32>,
    } else {
    }
    %c0 = arith.constant 0 : index
    %c0_1 = arith.constant 0 : index
    %3 = vector.load %arg2[%c0, %c0_1] : memref<16x128xf32, #tpu.memory_space<vmem>>, vector<16x128xf32>
    %c0_2 = arith.constant 0 : index
    %c0_3 = arith.constant 0 : index
    %4 = vector.load %arg3[%c0_2, %c0_3] : memref<16x128xf32, #tpu.memory_space<vmem>>, vector<16x128xf32>
    %5 = arith.subf %3, %4 : vector<16x128xf32>
    %6 = arith.mulf %5, %5 : vector<16x128xf32>
    %cst = arith.constant 9.99999996E-13 : f32
    %7 = vector.broadcast %cst : f32 to vector<16x128xf32>
    %8 = arith.addf %6, %7 : vector<16x128xf32>
    %9 = math.sqrt %8 : vector<16x128xf32>
    %c0_4 = arith.constant 0 : index
    %c0_5 = arith.constant 0 : index
    %c0_6 = arith.constant 0 : index
    %10 = vector.load %arg4[%c0_4, %c0_5, %c0_6] : memref<1x8x128xf32, #tpu.memory_space<vmem>>, vector<1x8x128xf32>
    %11 = vector.shape_cast %10 : vector<1x8x128xf32> to vector<8x128xf32>
    %12 = vector.shape_cast %9 : vector<16x128xf32> to vector<2x8x128xf32>
    %cst_7 = arith.constant dense<0.000000e+00> : vector<8x128xf32>
    %13 = vector.multi_reduction <add>, %12, %cst_7 [0] : vector<2x8x128xf32> to vector<8x128xf32>
    %14 = arith.addf %11, %13 : vector<8x128xf32>
    %c0_8 = arith.constant 0 : index
    %c0_9 = arith.constant 0 : index
    %c0_10 = arith.constant 0 : index
    %15 = vector.load %arg4[%c0_8, %c0_9, %c0_10] : memref<1x8x128xf32, #tpu.memory_space<vmem>>, vector<1x8x128xf32>
    %16 = vector.shape_cast %15 : vector<1x8x128xf32> to vector<8x128xf32>
    %17 = vector.shape_cast %14 : vector<8x128xf32> to vector<1x8x128xf32>
    tpu.vector_store %arg4[%c0_8, %c0_9, %c0_10], %17 {strides = array<i32>} : memref<1x8x128xf32, #tpu.memory_space<vmem>>, vector<1x8x128xf32>,
    return
  }
  func.func @transform_0(%arg0: i32, %arg1: i32) -> (i32, i32) {
    %c1_i32 = arith.constant 1 : i32
    %0 = arith.muli %arg0, %c1_i32 : i32
    %1 = arith.addi %0, %arg1 : i32
    %c0_i32 = arith.constant 0 : i32
    %c0_i32_0 = arith.constant 0 : i32
    return %1, %c0_i32 : i32, i32
  }
  func.func @transform_1(%arg0: i32, %arg1: i32) -> (i32, i32) {
    %c1_i32 = arith.constant 1 : i32
    %0 = arith.muli %arg0, %c1_i32 : i32
    %1 = arith.addi %0, %arg1 : i32
    %c0_i32 = arith.constant 0 : i32
    %c0_i32_0 = arith.constant 0 : i32
    return %1, %c0_i32 : i32, i32
  }
  func.func @transform_2(%arg0: i32, %arg1: i32) -> (i32, i32, i32) {
    %c0_i32 = arith.constant 0 : i32
    %c0_i32_0 = arith.constant 0 : i32
    %c0_i32_1 = arith.constant 0 : i32
    return %arg0, %c0_i32, %c0_i32_0 : i32, i32, i32
  }
}

</mosaic_0001>

<llo_original>
// kernel: l1_charbonnier_loss.1
$region0: #{l1_charbonnier_loss.1}
  #allocation0 [shape = 'u32[]', space=smem, size = 0x4, offset = 0x4, fixed_abs, tag = 'smem constant byte address 0x4 - core index']
  #allocation1 [shape = 'u32[144,128]{1,0:T(1,128)}', space=vmem, size = 0x12000, scoped, tag = 'internal scratch']
  %s0 = inlined_call_operand.vmem [shape: f32[16,128], index: 0, kind: input, shape index: {}]
  %s1 = inlined_call_operand.vmem [shape: f32[16,128], index: 1, kind: input, shape index: {}]
  %s2 = inlined_call_operand.vmem [shape: f32[1,8,128], index: 2, kind: output, shape index: {}]
  %s3 = sld [smem:[#allocation0]]
  $region22: #{l1_charbonnier_loss.1} parent=0
    _
  %s5 = ssub.s32 1, %s3
  %s6 = scalar_select 0, %s5, %s3
  // Predicated region
  $region2: #{l1_charbonnier_loss.1} parent=0 // pred_check
    _
  $region3: #{l1_charbonnier_loss.1} parent=0 // pred_check_branch
    %8 = sbr.rel (0) target = $region5
  $region4: #{l1_charbonnier_loss.1} parent=0 // pred_region
    %s9 = sadd.s32 0, 0
    %s10 = smul.u32 2, %s9
    %p11 = scmp.lt.s32.totalorder %s10, 1
    %s12 = scalar_select %p11, %s10, 1
    %s13 = smul.addr %s12, 8
    %s14 = scalar_lea.vmem %s0, %s13
    %s15 = sadd.s32 0, 0
    %s16 = smul.u32 2, %s15
  $region5: #{l1_charbonnier_loss.1} parent=0 // pred_fallthru
    _
  // Predicated region
  $region6: #{l1_charbonnier_loss.1} parent=0 // pred_check
    _
  $region7: #{l1_charbonnier_loss.1} parent=0 // pred_check_branch
    %18 = sbr.rel (0) target = $region9
  $region8: #{l1_charbonnier_loss.1} parent=0 // pred_region
    %s19 = sadd.s32 0, 0
    %s20 = smul.u32 2, %s19
    %p21 = scmp.lt.s32.totalorder %s20, 1
    %s22 = scalar_select %p21, %s20, 1
    %s23 = smul.addr %s22, 8
    %s24 = scalar_lea.vmem %s1, %s23
    %s25 = sadd.s32 0, 0
    %s26 = smul.u32 2, %s25
  $region9: #{l1_charbonnier_loss.1} parent=0 // pred_fallthru
    _
  %s27 = sadd.s32 0, 0
  %s28 = smul.u32 2, %s27
  %p29 = scmp.lt.s32.totalorder %s28, 1
  %s30 = scalar_select %p29, %s28, 1
  %s31 = smul.addr %s30, 8
  %s32 = scalar_lea.vmem %s0, %s31
  %s33 = sadd.s32 0, 0
  %s34 = smul.u32 2, %s33
  %p35 = scmp.lt.s32.totalorder %s34, 1
  %s36 = scalar_select %p35, %s34, 1
  %s37 = smul.addr %s36, 8
  %s38 = scalar_lea.vmem %s1, %s37
  %s39 = sadd.s32 0, 0
  %s40 = smul.u32 2, %s39
  %p41 = scmp.lt.s32.totalorder %s40, 1
  %s42 = scalar_select %p41, %s40, 1
  %s43 = smul.addr %s42, 8
  %s44 = scalar_lea.vmem %s0, %s43
  %s45 = sadd.s32 0, 0
  %s46 = smul.u32 2, %s45
  %s47 = sadd.s32 0, 0
  %s48 = smul.u32 2, %s47
  %p49 = scmp.lt.s32.totalorder %s48, 1
  %s50 = scalar_select %p49, %s48, 1
  %s51 = smul.addr %s50, 8
  %s52 = scalar_lea.vmem %s1, %s51
  %s53 = sadd.s32 0, 0
  %s54 = smul.u32 2, %s53
  %p55 = scmp.eq.s32.totalorder 0, 0
  // Predicated region
  $region10: #{l1_charbonnier_loss.1} parent=0 // pred_check
    %p56 = pneg %p55
  $region11: #{l1_charbonnier_loss.1} parent=0 // pred_check_branch
    %58 = sbr.rel (%p56) target = $region13
  $region12: #{l1_charbonnier_loss.1} parent=0 // pred_region
    %59 = vst [vmem:[%s2] sm:$0xff] 0.0
  $region13: #{l1_charbonnier_loss.1} parent=0 // pred_fallthru
    _
  %v60 = vld [vmem:[%s44] sm:$0xff]
  %v61 = vld [vmem:[%s44 + $0x8] sm:$0xff]
  %v62 = vld [vmem:[%s52] sm:$0xff]
  %v63 = vld [vmem:[%s52 + $0x8] sm:$0xff]
  %v64 = vsub.f32 %v60, %v62
  %v65 = vsub.f32 %v61, %v63
  %v66 = vmul.f32 %v64, %v64
  %v67 = vmul.f32 %v65, %v65
  %v68 = vadd.f32 %v66, 1e-12
  %v69 = vadd.f32 %v67, 1e-12
  %v70 = vrsqrt.pop %v68
  %v71 = vmul.f32 %v68, %v70
  %vm72 = vcmp.eq.f32.partialorder %v68, inf
  %v73 = vsel %vm72, %v68, %v71
  %vm74 = vcmp.eq.f32.partialorder %v68, 0.0
  %v75 = vand.u32 %v68, 2147483648
  %v76 = vsel %vm74, %v75, %v73
  %v77 = vrsqrt.pop %v69
  %v78 = vmul.f32 %v69, %v77
  %vm79 = vcmp.eq.f32.partialorder %v69, inf
  %v80 = vsel %vm79, %v69, %v78
  %vm81 = vcmp.eq.f32.partialorder %v69, 0.0
  %v82 = vand.u32 %v69, 2147483648
  %v83 = vsel %vm81, %v82, %v80
  %v84 = vld [vmem:[%s2] sm:$0xff]
  %v85 = vadd.f32 %v76, %v83
  %v86 = vadd.f32 %v84, %v85
  %87 = vst [vmem:[%s2] sm:$0xff] %v86
  // Predicated region
  $region14: #{l1_charbonnier_loss.1} parent=0 // pred_check
    _
  $region15: #{l1_charbonnier_loss.1} parent=0 // pred_check_branch
    %89 = sbr.rel (0) target = $region17
  $region16: #{l1_charbonnier_loss.1} parent=0 // pred_region
    _
  $region17: #{l1_charbonnier_loss.1} parent=0 // pred_fallthru
    _
  // Predicated region
  $region18: #{l1_charbonnier_loss.1} parent=0 // pred_check
    _
  $region19: #{l1_charbonnier_loss.1} parent=0 // pred_check_branch
    %91 = sbr.rel (0) target = $region21
  $region20: #{l1_charbonnier_loss.1} parent=0 // pred_region
    _
  $region21: #{l1_charbonnier_loss.1} parent=0 // pred_fallthru
    _

</llo_original>
